<compile_context>
chip_gen: v6e
topology: v6e:2x2x1
jax: 0.10.0
libtpu: 0.0.40
codegen_flags: <defaults>
</compile_context>

<pallas_src>
import jax
import jax.numpy as jnp
from jax.experimental import pallas as pl
from jax.experimental.pallas import tpu as pltpu

BN_EPS = 1e-5


def _gin_fused_kernel(x_ref, adj_ref, w1_ref, b1_ref, w2_ref, b2_ref, out_ref):
    """Whole GIN forward in one invocation.

    x_ref   [N, F]       node features
    adj_ref [N, N]       dense adjacency
    w1_ref  [F, L*F]     per-layer first Linear weights (internal BN folded), concatenated
    b1_ref  [1, L*F]     matching bias
    w2_ref  [L*F, L*F]   block-diagonal second Linear weights (outer BN folded)
    b2_ref  [1, L*F]     matching bias
    out_ref [N, L*F]     all layer outputs, layer-major along the lane axis
    """
    F = x_ref.shape[-1]
    LF = b1_ref.shape[-1]

    x = x_ref[...]
    adj = adj_ref[...]

    # GINConv aggregation (eps = 0); identical for every layer -> compute once.
    agg = x + jnp.dot(adj, x, preferred_element_type=jnp.float32)            # [N, F]

    # First Linear (+ folded internal BatchNorm) of every layer in one matmul,
    # then the MLP-internal ReLU.
    h = jnp.dot(agg, w1_ref[...], preferred_element_type=jnp.float32) + b1_ref[...]
    h = jnp.maximum(h, 0.0)                                                  # [N, L*F]

    # Second Linear (+ folded outer BatchNorm), block-diagonal over layers.
    h = jnp.dot(h, w2_ref[...], preferred_element_type=jnp.float32) + b2_ref[...]

    # Final per-layer ReLU on every layer except the last; dropout is identity in eval.
    col = jax.lax.broadcasted_iota(jnp.int32, h.shape, 1)
    out_ref[...] = jnp.where(col < LF - F, jnp.maximum(h, 0.0), h)


def _fold_bn(w, b, gamma, beta, mean, var):
    """Fold an eval-mode BatchNorm1d that follows Linear(w, b) into (w, b).

    w: [L, F_in, F_out], b/gamma/beta/mean/var: [L, F_out].
    """
    inv = gamma * jax.lax.rsqrt(var + BN_EPS)              # [L, F_out]
    w_f = w * inv[:, None, :]                              # scale output columns
    b_f = (b - mean) * inv + beta
    return w_f, b_f


def _block_diag(mats):
    """[L, F, F] -> block-diagonal [L*F, L*F]."""
    L, F, _ = mats.shape
    out = jnp.zeros((L, F, L, F), mats.dtype)
    idx = jnp.arange(L)
    out = out.at[idx, :, idx, :].set(mats)
    return out.reshape(L * F, L * F)


def gin_forward(x, adj, params):
    """x: [N, F] f32, adj: [N, N] f32, params: dict of stacked per-layer params."""
    N, F = x.shape
    L = params["w1"].shape[0]
    LF = L * F

    # One-time parameter preprocessing: fold BN into Linear, fuse layers along
    # the output-feature (lane) axis.
    w1f, b1f = _fold_bn(params["w1"], params["b1"], params["g1"],
                        params["be1"], params["m1"], params["v1"])
    w2f, b2f = _fold_bn(params["w2"], params["b2"], params["g2"],
                        params["be2"], params["m2"], params["v2"])
    w1_cat = jnp.transpose(w1f, (1, 0, 2)).reshape(F, LF)   # [F, L*F]
    b1_cat = b1f.reshape(1, LF)
    w2_bd = _block_diag(w2f)                                # [L*F, L*F]
    b2_cat = b2f.reshape(1, LF)

    vmem = pl.BlockSpec(memory_space=pltpu.MemorySpace.VMEM)
    out = pl.pallas_call(
        _gin_fused_kernel,
        out_shape=jax.ShapeDtypeStruct((N, LF), jnp.float32),
        in_specs=[vmem] * 6,
        out_specs=vmem,
    )(x, adj, w1_cat, b1_cat, w2_bd, b2_cat)

    # [N, L*F] -> [L, N, F] to match torch.stack(h_list) layout.
    return jnp.transpose(out.reshape(N, L, F), (1, 0, 2))


def gin_reference(x, adj, params):
    """Pure-JAX reference of the unfused per-layer forward, for correctness."""
    L = params["w1"].shape[0]
    outs = []
    for l in range(L):
        agg = x + adj @ x
        h = agg @ params["w1"][l] + params["b1"][l]
        h = (h - params["m1"][l]) * (params["g1"][l] /
                                     jnp.sqrt(params["v1"][l] + BN_EPS)) + params["be1"][l]
        h = jnp.maximum(h, 0.0)
        h = h @ params["w2"][l] + params["b2"][l]
        h = (h - params["m2"][l]) * (params["g2"][l] /
                                     jnp.sqrt(params["v2"][l] + BN_EPS)) + params["be2"][l]
        if l != L - 1:
            h = jnp.maximum(h, 0.0)
        outs.append(h)
    return jnp.stack(outs)


def make_params(key, n_layer, nfeat):
    ks = jax.random.split(key, 12)
    scale = 1.0 / jnp.sqrt(nfeat)
    return {
        # MLP first Linear (stored as [F_in, F_out])
        "w1": jax.random.uniform(ks[0], (n_layer, nfeat, nfeat), jnp.float32, -scale, scale),
        "b1": jax.random.uniform(ks[1], (n_layer, nfeat), jnp.float32, -scale, scale),
        # MLP internal BatchNorm1d (eval: running stats)
        "g1": 1.0 + 0.1 * jax.random.normal(ks[2], (n_layer, nfeat), jnp.float32),
        "be1": 0.1 * jax.random.normal(ks[3], (n_layer, nfeat), jnp.float32),
        "m1": 0.1 * jax.random.normal(ks[4], (n_layer, nfeat), jnp.float32),
        "v1": 1.0 + 0.1 * jax.random.uniform(ks[5], (n_layer, nfeat), jnp.float32),
        # MLP second Linear
        "w2": jax.random.uniform(ks[6], (n_layer, nfeat, nfeat), jnp.float32, -scale, scale),
        "b2": jax.random.uniform(ks[7], (n_layer, nfeat), jnp.float32, -scale, scale),
        # outer BatchNorm1d
        "g2": 1.0 + 0.1 * jax.random.normal(ks[8], (n_layer, nfeat), jnp.float32),
        "be2": 0.1 * jax.random.normal(ks[9], (n_layer, nfeat), jnp.float32),
        "m2": 0.1 * jax.random.normal(ks[10], (n_layer, nfeat), jnp.float32),
        "v2": 1.0 + 0.1 * jax.random.uniform(ks[11], (n_layer, nfeat), jnp.float32),
    }


if __name__ == "__main__":
    N_LAYER = 5
    N_NODES = 16
    NFEAT = 32

    key = jax.random.PRNGKey(0)
    kx, ka, kp = jax.random.split(key, 3)

    x = jax.random.normal(kx, (N_NODES, NFEAT), jnp.float32)
    # dense binary adjacency, no self-loops
    adj = (jax.random.uniform(ka, (N_NODES, N_NODES)) < 0.3).astype(jnp.float32)
    adj = adj * (1.0 - jnp.eye(N_NODES, dtype=jnp.float32))

    params = make_params(kp, N_LAYER, NFEAT)

    out = gin_forward(x, adj, params)
    out = jax.block_until_ready(out)

    ref = gin_reference(x, adj, params)
    assert out.shape == (N_LAYER, N_NODES, NFEAT)
    assert jnp.allclose(out, ref, atol=2e-4, rtol=2e-4)

    print("KERNEL_OK")
</pallas_src>

<mosaic_0001>
module attributes {stable_mosaic.version = 11 : i64} {
  func.func @_gin_fused_kernel(%arg0: memref<16x32xf32, #tpu.memory_space<vmem>>, %arg1: memref<16x16xf32, #tpu.memory_space<vmem>>, %arg2: memref<32x160xf32, #tpu.memory_space<vmem>>, %arg3: memref<1x160xf32, #tpu.memory_space<vmem>>, %arg4: memref<160x160xf32, #tpu.memory_space<vmem>>, %arg5: memref<1x160xf32, #tpu.memory_space<vmem>>, %arg6: memref<16x160xf32, #tpu.memory_space<vmem>>) attributes {dimension_semantics = [], scalar_prefetch = 0 : i64, scratch_operands = 0 : i64, tpu.core_type = #tpu.core_type<tc>} {
    %c0 = arith.constant 0 : index
    %c0_0 = arith.constant 0 : index
    %0 = vector.load %arg0[%c0, %c0_0] : memref<16x32xf32, #tpu.memory_space<vmem>>, vector<16x32xf32>
    %c0_1 = arith.constant 0 : index
    %c0_2 = arith.constant 0 : index
    %1 = vector.load %arg1[%c0_1, %c0_2] : memref<16x16xf32, #tpu.memory_space<vmem>>, vector<16x16xf32>
    %cst = arith.constant dense<0.000000e+00> : vector<16x32xf32>
    %2 = tpu.matmul %1, %0, %cst {dimension_numbers = #tpu.dot_dimension_numbers<[1], [0], [0], [1], [0, 0, 1, 1], [], []>} : vector<16x16xf32>, vector<16x32xf32>, vector<16x32xf32> -> vector<16x32xf32>
    %3 = arith.addf %0, %2 : vector<16x32xf32>
    %c0_3 = arith.constant 0 : index
    %c0_4 = arith.constant 0 : index
    %4 = vector.load %arg2[%c0_3, %c0_4] : memref<32x160xf32, #tpu.memory_space<vmem>>, vector<32x160xf32>
    %cst_5 = arith.constant dense<0.000000e+00> : vector<16x160xf32>
    %5 = tpu.matmul %3, %4, %cst_5 {dimension_numbers = #tpu.dot_dimension_numbers<[1], [0], [0], [1], [0, 0, 1, 1], [], []>} : vector<16x32xf32>, vector<32x160xf32>, vector<16x160xf32> -> vector<16x160xf32>
    %c0_6 = arith.constant 0 : index
    %c0_7 = arith.constant 0 : index
    %6 = vector.load %arg3[%c0_6, %c0_7] : memref<1x160xf32, #tpu.memory_space<vmem>>, vector<1x160xf32>
    %7 = vector.broadcast %6 : vector<1x160xf32> to vector<16x160xf32>
    %8 = arith.addf %5, %7 : vector<16x160xf32>
    %cst_8 = arith.constant 0.000000e+00 : f32
    %9 = vector.broadcast %cst_8 : f32 to vector<16x160xf32>
    %10 = arith.maximumf %8, %9 : vector<16x160xf32>
    %c0_9 = arith.constant 0 : index
    %c0_10 = arith.constant 0 : index
    %11 = vector.load %arg4[%c0_9, %c0_10] : memref<160x160xf32, #tpu.memory_space<vmem>>, vector<160x160xf32>
    %cst_11 = arith.constant dense<0.000000e+00> : vector<16x160xf32>
    %12 = tpu.matmul %10, %11, %cst_11 {dimension_numbers = #tpu.dot_dimension_numbers<[1], [0], [0], [1], [0, 0, 1, 1], [], []>} : vector<16x160xf32>, vector<160x160xf32>, vector<16x160xf32> -> vector<16x160xf32>
    %c0_12 = arith.constant 0 : index
    %c0_13 = arith.constant 0 : index
    %13 = vector.load %arg5[%c0_12, %c0_13] : memref<1x160xf32, #tpu.memory_space<vmem>>, vector<1x160xf32>
    %14 = vector.broadcast %13 : vector<1x160xf32> to vector<16x160xf32>
    %15 = arith.addf %12, %14 : vector<16x160xf32>
    %16 = tpu.iota {dimensions = array<i32: 1>} : vector<16x160xi32>
    %c128_i32 = arith.constant 128 : i32
    %17 = vector.broadcast %c128_i32 : i32 to vector<16x160xi32>
    %18 = arith.cmpi slt, %16, %17 : vector<16x160xi32>
    %cst_14 = arith.constant 0.000000e+00 : f32
    %19 = vector.broadcast %cst_14 : f32 to vector<16x160xf32>
    %20 = arith.maximumf %15, %19 : vector<16x160xf32>
    %21 = arith.select %18, %20, %15 : vector<16x160xi1>, vector<16x160xf32>
    %c0_15 = arith.constant 0 : index
    %c0_16 = arith.constant 0 : index
    %22 = vector.load %arg6[%c0_15, %c0_16] : memref<16x160xf32, #tpu.memory_space<vmem>>, vector<16x160xf32>
    tpu.vector_store %arg6[%c0_15, %c0_16], %21 {strides = array<i32>} : memref<16x160xf32, #tpu.memory_space<vmem>>, vector<16x160xf32>,
    return
  }
}

</mosaic_0001>

<llo_original>
// kernel: tpu_custom_call.1
$region0: #{tpu_custom_call.1}
  #allocation0 [shape = 'u32[]', space=smem, size = 0x4, offset = 0x4, fixed_abs, tag = 'smem constant byte address 0x4 - core index']
  #allocation1 [shape = 'u32[144,128]{1,0:T(1,128)}', space=vmem, size = 0x12000, scoped, tag = 'internal scratch']
  %s0 = inlined_call_operand.hbm [shape: f32[16,32], index: 0, kind: input, shape index: {}]
  %s1 = inlined_call_operand.hbm [shape: f32[16,16], index: 1, kind: input, shape index: {}]
  %s2 = inlined_call_operand.hbm [shape: f32[32,160], index: 2, kind: input, shape index: {}]
  %s3 = inlined_call_operand.vmem [shape: f32[1,160], index: 3, kind: input, shape index: {}]
  %s4 = inlined_call_operand.hbm [shape: f32[160,160], index: 4, kind: input, shape index: {}]
  %s5 = inlined_call_operand.vmem [shape: f32[1,160], index: 5, kind: input, shape index: {}]
  %s6 = inlined_call_operand.hbm [shape: f32[16,160], index: 6, kind: output, shape index: {}]
  %s7 = sld [smem:[#allocation0]]
  $region50: #{tpu_custom_call.1} parent=0
    _
  %s9 = ssub.s32 1, %s7
  %s10 = scalar_select 0, %s9, %s7
  $region1: #{tpu_custom_call.1} parent=0
    #allocation2 [shape = 'u8[8192]{0}', space=vmem, size = 0x2000, scoped, tag = 'input window, operand 0, single buffered']
    #allocation3 [shape = 's32[1]{0}', space=sflag, size = 0x4, scoped, tag = 'scoped memory for tpu_custom_call.1']
    #allocation4 [shape = 's32[1]{0}', space=sflag, size = 0x4, scoped, tag = 'scoped memory for tpu_custom_call.1']
    #allocation5 [shape = 'u8[8192]{0}', space=vmem, size = 0x2000, scoped, tag = 'input window, operand 1, single buffered']
    #allocation6 [shape = 's32[1]{0}', space=sflag, size = 0x4, scoped, tag = 'scoped memory for tpu_custom_call.1']
    #allocation7 [shape = 'u8[32768]{0}', space=vmem, size = 0x8000, scoped, tag = 'input window, operand 2, single buffered']
    #allocation8 [shape = 'u8[163840]{0}', space=vmem, size = 0x28000, scoped, tag = 'input window, operand 4, single buffered']
    #allocation9 [shape = 's32[1]{0}', space=sflag, size = 0x4, scoped, tag = 'scoped memory for tpu_custom_call.1']
    #allocation10 [shape = 'u8[16384]{0}', space=vmem, size = 0x4000, scoped, tag = 'output window, operand 0, single buffered']
    %11 = vsyncpa [#allocation3], 0
    %12 = vsyncpa [#allocation6], 0
    %13 = vsyncpa [#allocation9], 0
    %14 = vsyncpa [#allocation4], 0
    // Predicated region
    $region2: #{tpu_custom_call.1} parent=1 // pred_check
      _
    $region3: #{tpu_custom_call.1} parent=1 // pred_check_branch
      %16 = sbr.rel (0) target = $region5
    $region4: #{tpu_custom_call.1} parent=1 // pred_region
      %s18 = ssub.s32 256, 256
      %19 = vsyncadd [#allocation3], %s18
      %s20 = sshll.u32 [#allocation2], 4
      %s21 = int_to_ptr.vmem [resolvable:$true] %s20
      %26 = dma.hbm_to_vmem [thread:$0]  %s0, 256, %s21, [#allocation3], 128, 128, 8
    $region5: #{tpu_custom_call.1} parent=1 // pred_fallthru
      _
    // Predicated region
    $region6: #{tpu_custom_call.1} parent=1 // pred_check
      _
    $region7: #{tpu_custom_call.1} parent=1 // pred_check_branch
      %28 = sbr.rel (0) target = $region9
    $region8: #{tpu_custom_call.1} parent=1 // pred_region
      %s30 = ssub.s32 256, 256
      %31 = vsyncadd [#allocation6], %s30
      %s32 = sshll.u32 [#allocation5], 4
      %s33 = int_to_ptr.vmem [resolvable:$true] %s32
      %38 = dma.hbm_to_vmem [thread:$0]  %s1, 256, %s33, [#allocation6], 128, 128, 8
    $region9: #{tpu_custom_call.1} parent=1 // pred_fallthru
      _
    // Predicated region
    $region10: #{tpu_custom_call.1} parent=1 // pred_check
      _
    $region11: #{tpu_custom_call.1} parent=1 // pred_check_branch
      %40 = sbr.rel (0) target = $region13
    $region12: #{tpu_custom_call.1} parent=1 // pred_region
      %s42 = ssub.s32 1024, 1024
      %43 = vsyncadd [#allocation6], %s42
      %s44 = sshll.u32 [#allocation7], 4
      %s45 = int_to_ptr.vmem [resolvable:$true] %s44
      %50 = dma.hbm_to_vmem [thread:$0]  %s2, 1024, %s45, [#allocation6], 256, 256, 16
    $region13: #{tpu_custom_call.1} parent=1 // pred_fallthru
      _
    // Predicated region
    $region14: #{tpu_custom_call.1} parent=1 // pred_check
      _
    $region15: #{tpu_custom_call.1} parent=1 // pred_check_branch
      %52 = sbr.rel (0) target = $region17
    $region16: #{tpu_custom_call.1} parent=1 // pred_region
      _
    $region17: #{tpu_custom_call.1} parent=1 // pred_fallthru
      _
    // Predicated region
    $region18: #{tpu_custom_call.1} parent=1 // pred_check
      _
    $region19: #{tpu_custom_call.1} parent=1 // pred_check_branch
      %54 = sbr.rel (0) target = $region21
    $region20: #{tpu_custom_call.1} parent=1 // pred_region
      %s56 = ssub.s32 5120, 5120
      %57 = vsyncadd [#allocation9], %s56
      %s58 = sshll.u32 [#allocation8], 4
      %s59 = int_to_ptr.vmem [resolvable:$true] %s58
      %64 = dma.hbm_to_vmem [thread:$0]  %s4, 5120, %s59, [#allocation9], 256, 256, 16
    $region21: #{tpu_custom_call.1} parent=1 // pred_fallthru
      _
    // Predicated region
    $region22: #{tpu_custom_call.1} parent=1 // pred_check
      _
    $region23: #{tpu_custom_call.1} parent=1 // pred_check_branch
      %66 = sbr.rel (0) target = $region25
    $region24: #{tpu_custom_call.1} parent=1 // pred_region
      _
    $region25: #{tpu_custom_call.1} parent=1 // pred_fallthru
      _
    // Predicated region
    $region26: #{tpu_custom_call.1} parent=1 // pred_check
      _
    $region27: #{tpu_custom_call.1} parent=1 // pred_check_branch
      %68 = sbr.rel (0) target = $region29
    $region28: #{tpu_custom_call.1} parent=1 // pred_region
      %69 = dma.done [#allocation3], 256
    $region29: #{tpu_custom_call.1} parent=1 // pred_fallthru
      _
    // Predicated region
    $region30: #{tpu_custom_call.1} parent=1 // pred_check
      _
    $region31: #{tpu_custom_call.1} parent=1 // pred_check_branch
      %71 = sbr.rel (0) target = $region33
    $region32: #{tpu_custom_call.1} parent=1 // pred_region
      %72 = dma.done [#allocation6], 256
    $region33: #{tpu_custom_call.1} parent=1 // pred_fallthru
      _
    // Predicated region
    $region34: #{tpu_custom_call.1} parent=1 // pred_check
      _
    $region35: #{tpu_custom_call.1} parent=1 // pred_check_branch
      %74 = sbr.rel (0) target = $region37
    $region36: #{tpu_custom_call.1} parent=1 // pred_region
      %75 = dma.done [#allocation6], 1024
    $region37: #{tpu_custom_call.1} parent=1 // pred_fallthru
      _
    // Predicated region
    $region38: #{tpu_custom_call.1} parent=1 // pred_check
      _
    $region39: #{tpu_custom_call.1} parent=1 // pred_check_branch
      %77 = sbr.rel (0) target = $region41
    $region40: #{tpu_custom_call.1} parent=1 // pred_region
      %78 = dma.done [#allocation9], 5120
    $region41: #{tpu_custom_call.1} parent=1 // pred_fallthru
      _
    %v79 = vld [vmem:[#allocation2] sm:$0xff]
    %v80 = vld [vmem:[#allocation2 + $0x8] sm:$0xff]
    %v81 = vld [vmem:[#allocation5] sm:$0xff]
    %v82 = vld [vmem:[#allocation5 + $0x8] sm:$0xff]
    %vm83 = vcmask 130048
    %v85 = vsel %vm83, %v81, 0
    %v88 = vsel %vm83, %v82, 0
    %90 = vmatprep.subr.mxu0 0.0
    %91 = vmatpush1.msra.mxu0 0.0
    %92 = vmatprep.subr.mxu0 0.0
    %93 = vmatpush1.msra.mxu0 0.0
    %94 = vmatprep.subr.mxu0 0.0
    %95 = vmatpush1.msra.mxu0 0.0
    %96 = vmatprep.subr.mxu0 0.0
    %97 = vmatpush1.msra.mxu0 0.0
    %98 = vmatprep.subr.mxu0 0.0
    %99 = vmatpush1.msra.mxu0 0.0
    %100 = vmatprep.subr.mxu0 0.0
    %101 = vmatpush1.msra.mxu0 0.0
    %102 = vmatprep.subr.mxu0 0.0
    %103 = vmatpush1.msra.mxu0 0.0
    %104 = vmatprep.subr.mxu0 0.0
    %105 = vmatpush1.msra.mxu0 0.0
    %106 = vmatprep.subr.mxu0 0.0
    %107 = vmatpush1.msra.mxu0 0.0
    %108 = vmatprep.subr.mxu0 0.0
    %109 = vmatpush1.msra.mxu0 0.0
    %110 = vmatprep.subr.mxu0 0.0
    %111 = vmatpush1.msra.mxu0 0.0
    %112 = vmatprep.subr.mxu0 0.0
    %113 = vmatpush1.msra.mxu0 0.0
    %114 = vmatprep.subr.mxu0 0.0
    %115 = vmatpush1.msra.mxu0 0.0
    %116 = vmatprep.subr.mxu0 0.0
    %117 = vmatpush1.msra.mxu0 0.0
    %118 = vmatprep.subr.mxu0 0.0
    %119 = vmatpush1.msra.mxu0 %v80
    %120 = vmatprep.subr.mxu0 0.0
    %121 = vmatpush1.msra.mxu0 %v79
    %122 = vmatprep.subr.mxu0 0.0
    %123 = vmatpush2.msra.mxu0 0.0
    %124 = vmatprep.subr.mxu0 0.0
    %125 = vmatpush2.msra.mxu0 0.0
    %126 = vmatprep.subr.mxu0 0.0
    %127 = vmatpush2.msra.mxu0 0.0
    %128 = vmatprep.subr.mxu0 0.0
    %129 = vmatpush2.msra.mxu0 0.0
    %130 = vmatprep.subr.mxu0 0.0
    %131 = vmatpush2.msra.mxu0 0.0
    %132 = vmatprep.subr.mxu0 0.0
    %133 = vmatpush2.msra.mxu0 0.0
    %134 = vmatprep.subr.mxu0 0.0
    %135 = vmatpush2.msra.mxu0 0.0
    %136 = vmatprep.subr.mxu0 0.0
    %137 = vmatpush2.msra.mxu0 0.0
    %138 = vmatprep.subr.mxu0 0.0
    %139 = vmatpush2.msra.mxu0 0.0
    %140 = vmatprep.subr.mxu0 0.0
    %141 = vmatpush2.msra.mxu0 0.0
    %142 = vmatprep.subr.mxu0 0.0
    %143 = vmatpush2.msra.mxu0 0.0
    %144 = vmatprep.subr.mxu0 0.0
    %145 = vmatpush2.msra.mxu0 0.0
    %146 = vmatprep.subr.mxu0 0.0
    %147 = vmatpush2.msra.mxu0 0.0
    %148 = vmatprep.subr.mxu0 0.0
    %149 = vmatpush2.msra.mxu0 0.0
    %150 = vmatprep.subr.mxu0 0.0
    %151 = vmatpush2.msra.mxu0 0.0
    %152 = vmatprep.subr.mxu0 0.0
    %153 = vmatpush2.msra.mxu0 0.0
    %154 = vmatprep.mubr.f32.mxu0 0.0
    %155 = vmatmul.mubr.f32.gmra.mxu0 %v85
    %v156 = vpop.f32.mrf.mxu0
    %v157 = vadd.f32 0.0, %v156
    %v158 = vpop.f32.mrf.mxu0
    %159 = vmatprep.mubr.f32.mxu0 0.0
    %160 = vmatmul.mubr.f32.gmra.mxu0 %v88
    %v161 = vpop.f32.mrf.mxu0
    %v162 = vadd.f32 0.0, %v161
    %v163 = vpop.f32.mrf.mxu0
    %164 = vdwg.mxu0
    %v165 = vadd.f32 %v79, %v157
    %v166 = vadd.f32 %v80, %v162
    %v167 = vld [vmem:[#allocation7] sm:$0xff]
    %v168 = vld [vmem:[#allocation7 + $0x8] sm:$0xff]
    %v169 = vld [vmem:[#allocation7 + $0x10] sm:$0xff]
    %v170 = vld [vmem:[#allocation7 + $0x18] sm:$0xff]
    %v171 = vld [vmem:[#allocation7 + $0x20] sm:$0xff]
    %v172 = vld [vmem:[#allocation7 + $0x28] sm:$0xff]
    %v173 = vld [vmem:[#allocation7 + $0x30] sm:$0xff]
    %v174 = vld [vmem:[#allocation7 + $0x38] sm:$0xff]
    %v175 = vld [vmem:[%s3] sm:$0x3]
    %v177 = vlaneseq
    %v178 = vshrl.u32 %v177, 7
    %v179 = vsub.s32 0, %v178
    %v180 = vrot.slane %v175, %v179
    %v181 = vlaneseq
    %v182 = vshrl.u32 %v181, 7
    %v183 = vsub.s32 1, %v182
    %v184 = vrot.slane %v175, %v183
    %vm187 = vcmask 261120
    %v189 = vsel %vm187, %v165, 0
    %v192 = vsel %vm187, %v166, 0
    %194 = vmatprep.subr.mxu0 0.0
    %195 = vmatpush1.msra.mxu0 0.0
    %196 = vmatprep.subr.mxu0 0.0
    %197 = vmatpush1.msra.mxu0 0.0
    %198 = vmatprep.subr.mxu0 0.0
    %199 = vmatpush1.msra.mxu0 0.0
    %200 = vmatprep.subr.mxu0 0.0
    %201 = vmatpush1.msra.mxu0 0.0
    %202 = vmatprep.subr.mxu0 0.0
    %203 = vmatpush1.msra.mxu0 0.0
    %204 = vmatprep.subr.mxu0 0.0
    %205 = vmatpush1.msra.mxu0 0.0
    %206 = vmatprep.subr.mxu0 0.0
    %207 = vmatpush1.msra.mxu0 0.0
    %208 = vmatprep.subr.mxu0 0.0
    %209 = vmatpush1.msra.mxu0 0.0
    %210 = vmatprep.subr.mxu0 0.0
    %211 = vmatpush1.msra.mxu0 0.0
    %212 = vmatprep.subr.mxu0 0.0
    %213 = vmatpush1.msra.mxu0 0.0
    %214 = vmatprep.subr.mxu0 0.0
    %215 = vmatpush1.msra.mxu0 0.0
    %216 = vmatprep.subr.mxu0 0.0
    %217 = vmatpush1.msra.mxu0 0.0
    %218 = vmatprep.subr.mxu0 %v174
    %219 = vmatpush1.msra.mxu0 %v173
    %220 = vmatprep.subr.mxu0 %v172
    %221 = vmatpush1.msra.mxu0 %v171
    %222 = vmatprep.subr.mxu0 %v170
    %223 = vmatpush1.msra.mxu0 %v169
    %224 = vmatprep.subr.mxu0 %v168
    %225 = vmatpush1.msra.mxu0 %v167
    %226 = vmatprep.subr.mxu0 0.0
    %227 = vmatpush2.msra.mxu0 0.0
    %228 = vmatprep.subr.mxu0 0.0
    %229 = vmatpush2.msra.mxu0 0.0
    %230 = vmatprep.subr.mxu0 0.0
    %231 = vmatpush2.msra.mxu0 0.0
    %232 = vmatprep.subr.mxu0 0.0
    %233 = vmatpush2.msra.mxu0 0.0
    %234 = vmatprep.subr.mxu0 0.0
    %235 = vmatpush2.msra.mxu0 0.0
    %236 = vmatprep.subr.mxu0 0.0
    %237 = vmatpush2.msra.mxu0 0.0
    %238 = vmatprep.subr.mxu0 0.0
    %239 = vmatpush2.msra.mxu0 0.0
    %240 = vmatprep.subr.mxu0 0.0
    %241 = vmatpush2.msra.mxu0 0.0
    %242 = vmatprep.subr.mxu0 0.0
    %243 = vmatpush2.msra.mxu0 0.0
    %244 = vmatprep.subr.mxu0 0.0
    %245 = vmatpush2.msra.mxu0 0.0
    %246 = vmatprep.subr.mxu0 0.0
    %247 = vmatpush2.msra.mxu0 0.0
    %248 = vmatprep.subr.mxu0 0.0
    %249 = vmatpush2.msra.mxu0 0.0
    %250 = vmatprep.subr.mxu0 0.0
    %251 = vmatpush2.msra.mxu0 0.0
    %252 = vmatprep.subr.mxu0 0.0
    %253 = vmatpush2.msra.mxu0 0.0
    %254 = vmatprep.subr.mxu0 0.0
    %255 = vmatpush2.msra.mxu0 0.0
    %256 = vmatprep.subr.mxu0 0.0
    %257 = vmatpush2.msra.mxu0 0.0
    %258 = vmatprep.mubr.f32.mxu0 0.0
    %259 = vmatmul.mubr.f32.gmra.mxu0 %v189
    %v260 = vpop.f32.mrf.mxu0
    %v261 = vadd.f32 %v180, %v260
    %v262 = vpop.f32.mrf.mxu0
    %v263 = vadd.f32 %v184, %v262
    %264 = vmatprep.mubr.f32.mxu0 0.0
    %265 = vmatmul.mubr.f32.gmra.mxu0 %v192
    %v266 = vpop.f32.mrf.mxu0
    %v267 = vadd.f32 %v180, %v266
    %v268 = vpop.f32.mrf.mxu0
    %v269 = vadd.f32 %v184, %v268
    %270 = vdwg.mxu0
    %v271 = vmax.f32 %v261, 0.0
    %v272 = vmax.f32 %v263, 0.0
    %v273 = vmax.f32 %v267, 0.0
    %v274 = vmax.f32 %v269, 0.0
    %v275 = vld [vmem:[#allocation8] sm:$0xff]
    %v276 = vld [vmem:[#allocation8 + $0x8] sm:$0xff]
    %v277 = vld [vmem:[#allocation8 + $0x10] sm:$0xff]
    %v278 = vld [vmem:[#allocation8 + $0x18] sm:$0xff]
    %v279 = vld [vmem:[#allocation8 + $0x20] sm:$0xff]
    %v280 = vld [vmem:[#allocation8 + $0x28] sm:$0xff]
    %v281 = vld [vmem:[#allocation8 + $0x30] sm:$0xff]
    %v282 = vld [vmem:[#allocation8 + $0x38] sm:$0xff]
    %v283 = vld [vmem:[#allocation8 + $0x40] sm:$0xff]
    %v284 = vld [vmem:[#allocation8 + $0x48] sm:$0xff]
    %v285 = vld [vmem:[#allocation8 + $0x50] sm:$0xff]
    %v286 = vld [vmem:[#allocation8 + $0x58] sm:$0xff]
    %v287 = vld [vmem:[#allocation8 + $0x60] sm:$0xff]
    %v288 = vld [vmem:[#allocation8 + $0x68] sm:$0xff]
    %v289 = vld [vmem:[#allocation8 + $0x70] sm:$0xff]
    %v290 = vld [vmem:[#allocation8 + $0x78] sm:$0xff]
    %v291 = vld [vmem:[#allocation8 + $0x80] sm:$0xff]
    %v292 = vld [vmem:[#allocation8 + $0x88] sm:$0xff]
    %v293 = vld [vmem:[#allocation8 + $0x90] sm:$0xff]
    %v294 = vld [vmem:[#allocation8 + $0x98] sm:$0xff]
    %v295 = vld [vmem:[#allocation8 + $0xa0] sm:$0xff]
    %v296 = vld [vmem:[#allocation8 + $0xa8] sm:$0xff]
    %v297 = vld [vmem:[#allocation8 + $0xb0] sm:$0xff]
    %v298 = vld [vmem:[#allocation8 + $0xb8] sm:$0xff]
    %v299 = vld [vmem:[#allocation8 + $0xc0] sm:$0xff]
    %v300 = vld [vmem:[#allocation8 + $0xc8] sm:$0xff]
    %v301 = vld [vmem:[#allocation8 + $0xd0] sm:$0xff]
    %v302 = vld [vmem:[#allocation8 + $0xd8] sm:$0xff]
    %v303 = vld [vmem:[#allocation8 + $0xe0] sm:$0xff]
    %v304 = vld [vmem:[#allocation8 + $0xe8] sm:$0xff]
    %v305 = vld [vmem:[#allocation8 + $0xf0] sm:$0xff]
    %v306 = vld [vmem:[#allocation8 + $0xf8] sm:$0xff]
    %v307 = vld [vmem:[#allocation8 + $0x100] sm:$0xff]
    %v308 = vld [vmem:[#allocation8 + $0x108] sm:$0xff]
    %v309 = vld [vmem:[#allocation8 + $0x110] sm:$0xff]
    %v310 = vld [vmem:[#allocation8 + $0x118] sm:$0xff]
    %v311 = vld [vmem:[#allocation8 + $0x120] sm:$0xff]
    %v312 = vld [vmem:[#allocation8 + $0x128] sm:$0xff]
    %v313 = vld [vmem:[#allocation8 + $0x130] sm:$0xff]
    %v314 = vld [vmem:[#allocation8 + $0x138] sm:$0xff]
    %v315 = vld [vmem:[%s5] sm:$0x3]
    %v317 = vlaneseq
    %v318 = vshrl.u32 %v317, 7
    %v319 = vsub.s32 0, %v318
    %v320 = vrot.slane %v315, %v319
    %v321 = vlaneseq
    %v322 = vshrl.u32 %v321, 7
    %v323 = vsub.s32 1, %v322
    %v324 = vrot.slane %v315, %v323
    %v328 = vsel %vm187, %v272, 0
    %v331 = vsel %vm187, %v274, 0
    %333 = vmatprep.subr.mxu0 %v306
    %334 = vmatpush1.msra.mxu0 %v305
    %335 = vmatprep.subr.mxu0 %v304
    %336 = vmatpush1.msra.mxu0 %v303
    %337 = vmatprep.subr.mxu0 %v302
    %338 = vmatpush1.msra.mxu0 %v301
    %339 = vmatprep.subr.mxu0 %v300
    %340 = vmatpush1.msra.mxu0 %v299
    %341 = vmatprep.subr.mxu0 %v298
    %342 = vmatpush1.msra.mxu0 %v297
    %343 = vmatprep.subr.mxu0 %v296
    %344 = vmatpush1.msra.mxu0 %v295
    %345 = vmatprep.subr.mxu0 %v294
    %346 = vmatpush1.msra.mxu0 %v293
    %347 = vmatprep.subr.mxu0 %v292
    %348 = vmatpush1.msra.mxu0 %v291
    %349 = vmatprep.subr.mxu0 %v290
    %350 = vmatpush1.msra.mxu0 %v289
    %351 = vmatprep.subr.mxu0 %v288
    %352 = vmatpush1.msra.mxu0 %v287
    %353 = vmatprep.subr.mxu0 %v286
    %354 = vmatpush1.msra.mxu0 %v285
    %355 = vmatprep.subr.mxu0 %v284
    %356 = vmatpush1.msra.mxu0 %v283
    %357 = vmatprep.subr.mxu0 %v282
    %358 = vmatpush1.msra.mxu0 %v281
    %359 = vmatprep.subr.mxu0 %v280
    %360 = vmatpush1.msra.mxu0 %v279
    %361 = vmatprep.subr.mxu0 %v278
    %362 = vmatpush1.msra.mxu0 %v277
    %363 = vmatprep.subr.mxu0 %v276
    %364 = vmatpush1.msra.mxu0 %v275
    %365 = vmatprep.subr.mxu0 0.0
    %366 = vmatpush2.msra.mxu0 0.0
    %367 = vmatprep.subr.mxu0 0.0
    %368 = vmatpush2.msra.mxu0 0.0
    %369 = vmatprep.subr.mxu0 0.0
    %370 = vmatpush2.msra.mxu0 0.0
    %371 = vmatprep.subr.mxu0 0.0
    %372 = vmatpush2.msra.mxu0 0.0
    %373 = vmatprep.subr.mxu0 0.0
    %374 = vmatpush2.msra.mxu0 0.0
    %375 = vmatprep.subr.mxu0 0.0
    %376 = vmatpush2.msra.mxu0 0.0
    %377 = vmatprep.subr.mxu0 0.0
    %378 = vmatpush2.msra.mxu0 0.0
    %379 = vmatprep.subr.mxu0 0.0
    %380 = vmatpush2.msra.mxu0 0.0
    %381 = vmatprep.subr.mxu0 0.0
    %382 = vmatpush2.msra.mxu0 0.0
    %383 = vmatprep.subr.mxu0 0.0
    %384 = vmatpush2.msra.mxu0 0.0
    %385 = vmatprep.subr.mxu0 0.0
    %386 = vmatpush2.msra.mxu0 0.0
    %387 = vmatprep.subr.mxu0 0.0
    %388 = vmatpush2.msra.mxu0 0.0
    %389 = vmatprep.subr.mxu0 %v314
    %390 = vmatpush2.msra.mxu0 %v313
    %391 = vmatprep.subr.mxu0 %v312
    %392 = vmatpush2.msra.mxu0 %v311
    %393 = vmatprep.subr.mxu0 %v310
    %394 = vmatpush2.msra.mxu0 %v309
    %395 = vmatprep.subr.mxu0 %v308
    %396 = vmatpush2.msra.mxu0 %v307
    %397 = vmatprep.mubr.f32.mxu0 %v328
    %398 = vmatmul.mubr.f32.gmra.mxu0 %v271
    %v399 = vpop.f32.mrf.mxu0
    %v400 = vadd.f32 %v320, %v399
    %v401 = vpop.f32.mrf.mxu0
    %v402 = vadd.f32 %v324, %v401
    %403 = vmatprep.mubr.f32.mxu0 %v331
    %404 = vmatmul.mubr.f32.gmra.mxu0 %v273
    %v405 = vpop.f32.mrf.mxu0
    %v406 = vadd.f32 %v320, %v405
    %v407 = vpop.f32.mrf.mxu0
    %v408 = vadd.f32 %v324, %v407
    %409 = vdwg.mxu0
    %v410 = vlaneseq
    %v411 = vand.u32 %v410, 127
    %v412 = vadd.s32 %v411, 128
    %vm413 = vcmp.lt.s32.totalorder %v411, 128
    %vm414 = vcmp.lt.s32.totalorder %v412, 128
    %v415 = vmax.f32 %v400, 0.0
    %v416 = vmax.f32 %v402, 0.0
    %v417 = vmax.f32 %v406, 0.0
    %v418 = vmax.f32 %v408, 0.0
    %v419 = vsel %vm413, %v415, %v400
    %v420 = vsel %vm414, %v416, %v402
    %v421 = vsel %vm413, %v417, %v406
    %v422 = vsel %vm414, %v418, %v408
    %423 = vst [vmem:[#allocation10] sm:$0xff] %v419
    %424 = vst.msk [vmem:[#allocation10 + $0x8] sm:$0xff] %vm187, %v420
    %425 = vst [vmem:[#allocation10 + $0x10] sm:$0xff] %v421
    %426 = vst.msk [vmem:[#allocation10 + $0x18] sm:$0xff] %vm187, %v422
    // Predicated region
    $region42: #{tpu_custom_call.1} parent=1 // pred_check
      _
    $region43: #{tpu_custom_call.1} parent=1 // pred_check_branch
      %428 = sbr.rel (0) target = $region45
    $region44: #{tpu_custom_call.1} parent=1 // pred_region
      %s430 = ssub.s32 512, 512
      %431 = vsyncadd [#allocation4], %s430
      %s432 = sshll.u32 [#allocation10], 4
      %s433 = int_to_ptr.vmem [resolvable:$true] %s432
      %438 = dma.vmem_to_hbm [thread:$0]  %s433, 512, %s6, [#allocation4], 256, 256, 16
    $region45: #{tpu_custom_call.1} parent=1 // pred_fallthru
      _
    // Predicated region
    $region46: #{tpu_custom_call.1} parent=1 // pred_check
      _
    $region47: #{tpu_custom_call.1} parent=1 // pred_check_branch
      %440 = sbr.rel (0) target = $region49
    $region48: #{tpu_custom_call.1} parent=1 // pred_region
      %441 = dma.done [#allocation4], 512
    $region49: #{tpu_custom_call.1} parent=1 // pred_fallthru
      _
    %442 = vsyncpa [#allocation3], 1
    %443 = vsyncpa [#allocation6], 1
    %444 = vsyncpa [#allocation9], 1
    %445 = vsyncpa [#allocation4], 1

</llo_original>
